<compile_context>
chip_gen: v7x
topology: tpu7x:2x2x1
jax: 0.10.0
libtpu: 0.0.40
codegen_flags: <defaults>
</compile_context>

<pallas_src>
import math

import jax
import jax.numpy as jnp
from jax.experimental import pallas as pl
from jax.experimental.pallas import tpu as pltpu


HIDDEN = 100          # nn.Linear(n_feats, 100) -> 100 -> 100
HPAD = 128            # lane-padded hidden width
MAX_TK = 2048         # K-tile upper bound (bf16 W1 tile = 512 KB)


def _round_up(x, m):
    return (x + m - 1) // m * m


def _fused_mlp_kernel(disc_ref, first_ref, last_ref,
                      x_ref, w1_ref, b1_ref, w2_ref, b2_ref, w3_ref, b3_ref,
                      o_ref, acc_ref):
    """Fused multi-disc MLP over a ragged 1-D K-tile schedule.

    Per step t: accumulate one K-tile of L1 for disc tile_disc[t] into the f32 VMEM
    scratch; on tile_first[t] reset it; on tile_last[t] apply bias+ReLU, run the
    128-wide L2/L3 (resident weights) and store the lane-dense (B_pad, 128) logits.
    """
    t = pl.program_id(0)

    @pl.when(first_ref[t] == 1)
    def _():
        acc_ref[...] = jnp.zeros_like(acc_ref)

    # L1 partial: (B_pad, tk) bf16 @ (tk, 128) bf16 -> f32 accumulate on the MXU.
    acc_ref[...] += jnp.dot(x_ref[...], w1_ref[...],
                            preferred_element_type=jnp.float32)

    @pl.when(last_ref[t] == 1)
    def _():
        h = jnp.maximum(acc_ref[...] + b1_ref[0], 0.0)
        h = jnp.maximum(
            jnp.dot(h, w2_ref[0], preferred_element_type=jnp.float32) + b2_ref[0],
            0.0)
        o_ref[0] = (
            jnp.dot(h, w3_ref[0], preferred_element_type=jnp.float32) + b3_ref[0]
        )


def _run_fused_discs(tile_disc, tile_first, tile_last,
                     x, w1, b1, w2, b2, w3, b3, *, tk):
    """x: (B_pad, K_total) bf16 packed along K; w1: (K_total, 128) bf16 packed along K.

    Returns (D, B_pad, 128) f32 logits (columns >= 100 are exactly zero).
    """
    b_pad, _ = x.shape
    num_discs = b1.shape[0]
    n_tiles = tile_disc.shape[0]

    grid_spec = pltpu.PrefetchScalarGridSpec(
        num_scalar_prefetch=3,
        grid=(n_tiles,),
        in_specs=[
            # x K-tile (packed K axis lines up with the tile schedule).
            pl.BlockSpec((b_pad, tk), lambda t, dsc, fst, lst: (0, t)),
            # W1 K-tile.
            pl.BlockSpec((tk, HPAD), lambda t, dsc, fst, lst: (t, 0)),
            # Per-disc small params: index depends only on tile_disc[t] -> stay
            # resident in VMEM across that disc's whole K loop.
            pl.BlockSpec((1, 1, HPAD), lambda t, dsc, fst, lst: (dsc[t], 0, 0)),     # b1
            pl.BlockSpec((1, HPAD, HPAD), lambda t, dsc, fst, lst: (dsc[t], 0, 0)),  # W2
            pl.BlockSpec((1, 1, HPAD), lambda t, dsc, fst, lst: (dsc[t], 0, 0)),     # b2
            pl.BlockSpec((1, HPAD, HPAD), lambda t, dsc, fst, lst: (dsc[t], 0, 0)),  # W3
            pl.BlockSpec((1, 1, HPAD), lambda t, dsc, fst, lst: (dsc[t], 0, 0)),     # b3
        ],
        out_specs=pl.BlockSpec((1, b_pad, HPAD),
                               lambda t, dsc, fst, lst: (dsc[t], 0, 0)),
        scratch_shapes=[pltpu.VMEM((b_pad, HPAD), jnp.float32)],
    )

    return pl.pallas_call(
        _fused_mlp_kernel,
        out_shape=jax.ShapeDtypeStruct((num_discs, b_pad, HPAD), jnp.float32),
        grid_spec=grid_spec,
        compiler_params=pltpu.CompilerParams(
            # Consecutive tiles share the accumulator and the output block.
            dimension_semantics=("arbitrary",),
            vmem_limit_bytes=32 * 1024 * 1024,   # explicit (v5e default scoped is 16 MiB)
        ),
    )(tile_disc, tile_first, tile_last, x, w1, b1, w2, b2, w3, b3)


def _init_linear(key, fan_in, fan_out):
    """torch.nn.Linear default init: U(-1/sqrt(fan_in), 1/sqrt(fan_in)).

    Stored as (in, out) so the kernel computes x @ W + b (== torch x @ W.T + b).
    """
    kw, kb = jax.random.split(key)
    bound = 1.0 / math.sqrt(fan_in)
    w = jax.random.uniform(kw, (fan_in, fan_out), jnp.float32, -bound, bound)
    b = jax.random.uniform(kb, (1, fan_out), jnp.float32, -bound, bound)
    return w, b


class MultiScaleDPallas:
    """MLP-branch MultiScaleD (conv=False), all discs fused into one Pallas kernel."""

    def __init__(self, channels, resolutions, num_discs=4, seed=0):
        assert num_discs in [1, 2, 3, 4]
        self.num_discs = num_discs
        self.disc_in_channels = list(channels[:num_discs])
        self.disc_in_res = list(resolutions[:num_discs])
        self.n_feats = [channels[i] * resolutions[i] for i in range(num_discs)]

        # K-tile: biggest lane multiple <= MAX_TK that the largest disc needs.
        self.tk = min(MAX_TK, _round_up(max(self.n_feats), 128))
        self.kpad = [_round_up(nf, self.tk) for nf in self.n_feats]      # per-disc padded K
        self.k_offsets = [0]
        for kp in self.kpad:
            self.k_offsets.append(self.k_offsets[-1] + kp)

        # Ragged 1-D tile schedule (host-side, static): which disc each K-tile belongs
        # to, and whether it is the first / last tile of that disc.
        tile_disc, tile_first, tile_last = [], [], []
        for i in range(num_discs):
            nk = self.kpad[i] // self.tk
            tile_disc += [i] * nk
            tile_first += [1] + [0] * (nk - 1)
            tile_last += [0] * (nk - 1) + [1]
        self.tile_disc = jnp.array(tile_disc, dtype=jnp.int32)
        self.tile_first = jnp.array(tile_first, dtype=jnp.int32)
        self.tile_last = jnp.array(tile_last, dtype=jnp.int32)

        key = jax.random.PRNGKey(seed)
        w1_blocks, b1s, w2s, b2s, w3s, b3s = [], [], [], [], [], []
        for i in range(num_discs):
            nf = self.n_feats[i]
            key, k1, k2, k3 = jax.random.split(key, 4)
            w1, b1 = _init_linear(k1, nf, HIDDEN)
            w2, b2 = _init_linear(k2, HIDDEN, HIDDEN)
            w3, b3 = _init_linear(k3, HIDDEN, HIDDEN)
            # Zero-pad to (kpad_i, 128) / (128, 128) / (1, 128): padded rows/cols
            # contribute exact zeros, so logits[:, :100] are unchanged.
            w1_blocks.append(
                jnp.zeros((self.kpad[i], HPAD), jnp.float32).at[:nf, :HIDDEN].set(w1))
            b1s.append(jnp.zeros((1, HPAD), jnp.float32).at[:, :HIDDEN].set(b1))
            w2s.append(jnp.zeros((HPAD, HPAD), jnp.float32).at[:HIDDEN, :HIDDEN].set(w2))
            b2s.append(jnp.zeros((1, HPAD), jnp.float32).at[:, :HIDDEN].set(b2))
            w3s.append(jnp.zeros((HPAD, HPAD), jnp.float32).at[:HIDDEN, :HIDDEN].set(w3))
            b3s.append(jnp.zeros((1, HPAD), jnp.float32).at[:, :HIDDEN].set(b3))

        # W1 packed along K and streamed as bf16 (MXU-native, halves DMA bytes);
        # small per-disc params stay f32.
        self.w1 = jnp.concatenate(w1_blocks, axis=0).astype(jnp.bfloat16)  # (K_total, 128)
        self.b1 = jnp.stack(b1s)                                            # (D, 1, 128)
        self.w2 = jnp.stack(w2s)                                            # (D, 128, 128)
        self.b2 = jnp.stack(b2s)
        self.w3 = jnp.stack(w3s)
        self.b3 = jnp.stack(b3s)

    def __call__(self, features):
        B = features["0"].shape[0]
        b_pad = _round_up(max(B, 8), 8)   # sublane-aligned batch

        # Flatten each disc's features (nn.Flatten: row-major, batch kept), pad each to
        # its per-disc K and pack along K -- mirrors the packed W1 layout.
        cols = []
        for i in range(self.num_discs):
            x = features[str(i)]
            x_flat = x.reshape(x.shape[0], -1).astype(jnp.bfloat16)
            cols.append(jnp.pad(
                x_flat,
                ((0, b_pad - B), (0, self.kpad[i] - x_flat.shape[1]))))
        x_packed = jnp.concatenate(cols, axis=1)              # (b_pad, K_total) bf16

        out = _run_fused_discs(self.tile_disc, self.tile_first, self.tile_last,
                               x_packed, self.w1, self.b1, self.w2, self.b2,
                               self.w3, self.b3, tk=self.tk)   # (D, b_pad, 128)

        # Drop padding and lay out as torch.cat([out_0, ..., out_{D-1}], dim=1).
        logits = out[:, :B, :HIDDEN]                           # (D, B, 100)
        return jnp.transpose(logits, (1, 0, 2)).reshape(B, self.num_discs * HIDDEN)


def _reference(model, features):
    """Pure-JAX reference using the same (bf16-rounded) inputs/W1 as the kernel."""
    outs = []
    for i in range(model.num_discs):
        x = features[str(i)]
        x = x.reshape(x.shape[0], -1).astype(jnp.bfloat16).astype(jnp.float32)
        nf = model.n_feats[i]
        off = model.k_offsets[i]
        w1 = model.w1[off:off + nf, :HIDDEN].astype(jnp.float32)
        b1 = model.b1[i, 0, :HIDDEN]
        w2 = model.w2[i, :HIDDEN, :HIDDEN]
        b2 = model.b2[i, 0, :HIDDEN]
        w3 = model.w3[i, :HIDDEN, :HIDDEN]
        b3 = model.b3[i, 0, :HIDDEN]
        h = jnp.maximum(x @ w1 + b1, 0.0)
        h = jnp.maximum(h @ w2 + b2, 0.0)
        outs.append(h @ w3 + b3)
    return jnp.concatenate(outs, axis=1)


if __name__ == "__main__":
    # Small synthetic configuration for the MLP branch: n_feats_i = channels[i] * resolutions[i]
    channels = [4, 8, 4, 8]
    resolutions = [16, 8, 32, 16]
    num_discs = 4
    B = 2

    model = MultiScaleDPallas(channels, resolutions, num_discs=num_discs, seed=0)

    key = jax.random.PRNGKey(0)
    features = {}
    for i in range(num_discs):
        key, sub = jax.random.split(key)
        # (B, C_i, R_i) feature tensors (flattened in the wrapper, like nn.Flatten on NCHW).
        features[str(i)] = jax.random.normal(
            sub, (B, channels[i], resolutions[i]), dtype=jnp.float32
        )

    out = model(features)
    out = jax.block_until_ready(out)
    assert out.shape == (B, HIDDEN * num_discs), out.shape

    ref = _reference(model, features)
    assert jnp.allclose(out, ref, atol=2e-2, rtol=2e-2), float(jnp.max(jnp.abs(out - ref)))

    print("KERNEL_OK")
</pallas_src>

<mosaic_0001>
module attributes {stable_mosaic.version = 11 : i64} {
  func.func @_fused_mlp_kernel(%arg0: i32, %arg1: memref<4xi32, #tpu.memory_space<smem>>, %arg2: memref<4xi32, #tpu.memory_space<smem>>, %arg3: memref<4xi32, #tpu.memory_space<smem>>, %arg4: memref<8x128xbf16, #tpu.memory_space<vmem>>, %arg5: memref<128x128xbf16, #tpu.memory_space<vmem>>, %arg6: memref<1x1x128xf32, #tpu.memory_space<vmem>>, %arg7: memref<1x128x128xf32, #tpu.memory_space<vmem>>, %arg8: memref<1x1x128xf32, #tpu.memory_space<vmem>>, %arg9: memref<1x128x128xf32, #tpu.memory_space<vmem>>, %arg10: memref<1x1x128xf32, #tpu.memory_space<vmem>>, %arg11: memref<1x8x128xf32, #tpu.memory_space<vmem>>, %arg12: memref<8x128xf32, #tpu.memory_space<vmem>>) attributes {dimension_semantics = [#tpu.dimension_semantics<arbitrary>], iteration_bounds = array<i64: 4>, scalar_prefetch = 3 : i64, scratch_operands = 1 : i64, tpu.core_type = #tpu.core_type<tc>, window_params = [{transform_indices = @transform_0, window_bounds = array<i64: 8, 128>}, {transform_indices = @transform_1, window_bounds = array<i64: 128, 128>}, {transform_indices = @transform_2, window_bounds = array<i64: 1, 1, 128>}, {transform_indices = @transform_3, window_bounds = array<i64: 1, 128, 128>}, {transform_indices = @transform_4, window_bounds = array<i64: 1, 1, 128>}, {transform_indices = @transform_5, window_bounds = array<i64: 1, 128, 128>}, {transform_indices = @transform_6, window_bounds = array<i64: 1, 1, 128>}, {transform_indices = @transform_7, window_bounds = array<i64: 1, 8, 128>}]} {
    %0 = arith.index_cast %arg0 : i32 to index
    %1 = memref.load %arg2[%0] : memref<4xi32, #tpu.memory_space<smem>>
    %c1_i32 = arith.constant 1 : i32
    %2 = arith.cmpi eq, %1, %c1_i32 : i32
    %3 = arith.extui %2 : i1 to i32
    %c0_i32 = arith.constant 0 : i32
    %4 = arith.cmpi ne, %3, %c0_i32 : i32
    scf.if %4 {
      %cst_9 = arith.constant 0.000000e+00 : f32
      %16 = vector.broadcast %cst_9 : f32 to vector<8x128xf32>
      %c0_10 = arith.constant 0 : index
      %c0_11 = arith.constant 0 : index
      %17 = vector.load %arg12[%c0_10, %c0_11] : memref<8x128xf32, #tpu.memory_space<vmem>>, vector<8x128xf32>
      tpu.vector_store %arg12[%c0_10, %c0_11], %16 {strides = array<i32>} : memref<8x128xf32, #tpu.memory_space<vmem>>, vector<8x128xf32>,
    } else {
    }
    %c0 = arith.constant 0 : index
    %c0_0 = arith.constant 0 : index
    %5 = vector.load %arg12[%c0, %c0_0] : memref<8x128xf32, #tpu.memory_space<vmem>>, vector<8x128xf32>
    %c0_1 = arith.constant 0 : index
    %c0_2 = arith.constant 0 : index
    %6 = vector.load %arg4[%c0_1, %c0_2] : memref<8x128xbf16, #tpu.memory_space<vmem>>, vector<8x128xbf16>
    %c0_3 = arith.constant 0 : index
    %c0_4 = arith.constant 0 : index
    %7 = vector.load %arg5[%c0_3, %c0_4] : memref<128x128xbf16, #tpu.memory_space<vmem>>, vector<128x128xbf16>
    %cst = arith.constant dense<0.000000e+00> : vector<8x128xf32>
    %8 = tpu.matmul %6, %7, %cst {dimension_numbers = #tpu.dot_dimension_numbers<[1], [0], [0], [1], [0, 0, 1, 1], [], []>} : vector<8x128xbf16>, vector<128x128xbf16>, vector<8x128xf32> -> vector<8x128xf32>
    %9 = arith.addf %5, %8 : vector<8x128xf32>
    %c0_5 = arith.constant 0 : index
    %c0_6 = arith.constant 0 : index
    %10 = vector.load %arg12[%c0_5, %c0_6] : memref<8x128xf32, #tpu.memory_space<vmem>>, vector<8x128xf32>
    tpu.vector_store %arg12[%c0_5, %c0_6], %9 {strides = array<i32>} : memref<8x128xf32, #tpu.memory_space<vmem>>, vector<8x128xf32>,
    %11 = arith.index_cast %arg0 : i32 to index
    %12 = memref.load %arg3[%11] : memref<4xi32, #tpu.memory_space<smem>>
    %c1_i32_7 = arith.constant 1 : i32
    %13 = arith.cmpi eq, %12, %c1_i32_7 : i32
    %14 = arith.extui %13 : i1 to i32
    %c0_i32_8 = arith.constant 0 : i32
    %15 = arith.cmpi ne, %14, %c0_i32_8 : i32
    scf.if %15 {
      %c0_9 = arith.constant 0 : index
      %c0_10 = arith.constant 0 : index
      %16 = vector.load %arg12[%c0_9, %c0_10] : memref<8x128xf32, #tpu.memory_space<vmem>>, vector<8x128xf32>
      %c0_11 = arith.constant 0 : index
      %c0_12 = arith.constant 0 : index
      %c0_13 = arith.constant 0 : index
      %17 = vector.load %arg6[%c0_11, %c0_12, %c0_13] : memref<1x1x128xf32, #tpu.memory_space<vmem>>, vector<1x1x128xf32>
      %18 = vector.shape_cast %17 : vector<1x1x128xf32> to vector<1x128xf32>
      %19 = vector.broadcast %18 : vector<1x128xf32> to vector<8x128xf32>
      %20 = arith.addf %16, %19 : vector<8x128xf32>
      %cst_14 = arith.constant 0.000000e+00 : f32
      %21 = vector.broadcast %cst_14 : f32 to vector<8x128xf32>
      %22 = arith.maximumf %20, %21 : vector<8x128xf32>
      %c0_15 = arith.constant 0 : index
      %c0_16 = arith.constant 0 : index
      %c0_17 = arith.constant 0 : index
      %23 = vector.load %arg7[%c0_15, %c0_16, %c0_17] : memref<1x128x128xf32, #tpu.memory_space<vmem>>, vector<1x128x128xf32>
      %24 = vector.shape_cast %23 : vector<1x128x128xf32> to vector<128x128xf32>
      %cst_18 = arith.constant dense<0.000000e+00> : vector<8x128xf32>
      %25 = tpu.matmul %22, %24, %cst_18 {dimension_numbers = #tpu.dot_dimension_numbers<[1], [0], [0], [1], [0, 0, 1, 1], [], []>} : vector<8x128xf32>, vector<128x128xf32>, vector<8x128xf32> -> vector<8x128xf32>
      %c0_19 = arith.constant 0 : index
      %c0_20 = arith.constant 0 : index
      %c0_21 = arith.constant 0 : index
      %26 = vector.load %arg8[%c0_19, %c0_20, %c0_21] : memref<1x1x128xf32, #tpu.memory_space<vmem>>, vector<1x1x128xf32>
      %27 = vector.shape_cast %26 : vector<1x1x128xf32> to vector<1x128xf32>
      %28 = vector.broadcast %27 : vector<1x128xf32> to vector<8x128xf32>
      %29 = arith.addf %25, %28 : vector<8x128xf32>
      %cst_22 = arith.constant 0.000000e+00 : f32
      %30 = vector.broadcast %cst_22 : f32 to vector<8x128xf32>
      %31 = arith.maximumf %29, %30 : vector<8x128xf32>
      %c0_23 = arith.constant 0 : index
      %c0_24 = arith.constant 0 : index
      %c0_25 = arith.constant 0 : index
      %32 = vector.load %arg9[%c0_23, %c0_24, %c0_25] : memref<1x128x128xf32, #tpu.memory_space<vmem>>, vector<1x128x128xf32>
      %33 = vector.shape_cast %32 : vector<1x128x128xf32> to vector<128x128xf32>
      %cst_26 = arith.constant dense<0.000000e+00> : vector<8x128xf32>
      %34 = tpu.matmul %31, %33, %cst_26 {dimension_numbers = #tpu.dot_dimension_numbers<[1], [0], [0], [1], [0, 0, 1, 1], [], []>} : vector<8x128xf32>, vector<128x128xf32>, vector<8x128xf32> -> vector<8x128xf32>
      %c0_27 = arith.constant 0 : index
      %c0_28 = arith.constant 0 : index
      %c0_29 = arith.constant 0 : index
      %35 = vector.load %arg10[%c0_27, %c0_28, %c0_29] : memref<1x1x128xf32, #tpu.memory_space<vmem>>, vector<1x1x128xf32>
      %36 = vector.shape_cast %35 : vector<1x1x128xf32> to vector<1x128xf32>
      %37 = vector.broadcast %36 : vector<1x128xf32> to vector<8x128xf32>
      %38 = arith.addf %34, %37 : vector<8x128xf32>
      %c0_30 = arith.constant 0 : index
      %c0_31 = arith.constant 0 : index
      %c0_32 = arith.constant 0 : index
      %39 = vector.load %arg11[%c0_30, %c0_31, %c0_32] : memref<1x8x128xf32, #tpu.memory_space<vmem>>, vector<1x8x128xf32>
      %40 = vector.shape_cast %39 : vector<1x8x128xf32> to vector<8x128xf32>
      %41 = vector.shape_cast %38 : vector<8x128xf32> to vector<1x8x128xf32>
      tpu.vector_store %arg11[%c0_30, %c0_31, %c0_32], %41 {strides = array<i32>} : memref<1x8x128xf32, #tpu.memory_space<vmem>>, vector<1x8x128xf32>,
    } else {
    }
    return
  }
  func.func @transform_0(%arg0: i32, %arg1: memref<4xi32, #tpu.memory_space<smem>>, %arg2: memref<4xi32, #tpu.memory_space<smem>>, %arg3: memref<4xi32, #tpu.memory_space<smem>>) -> (i32, i32) {
    %c0_i32 = arith.constant 0 : i32
    %c0_i32_0 = arith.constant 0 : i32
    return %c0_i32, %arg0 : i32, i32
  }
  func.func @transform_1(%arg0: i32, %arg1: memref<4xi32, #tpu.memory_space<smem>>, %arg2: memref<4xi32, #tpu.memory_space<smem>>, %arg3: memref<4xi32, #tpu.memory_space<smem>>) -> (i32, i32) {
    %c0_i32 = arith.constant 0 : i32
    %c0_i32_0 = arith.constant 0 : i32
    return %arg0, %c0_i32 : i32, i32
  }
  func.func @transform_2(%arg0: i32, %arg1: memref<4xi32, #tpu.memory_space<smem>>, %arg2: memref<4xi32, #tpu.memory_space<smem>>, %arg3: memref<4xi32, #tpu.memory_space<smem>>) -> (i32, i32, i32) {
    %0 = arith.index_cast %arg0 : i32 to index
    %1 = memref.load %arg1[%0] : memref<4xi32, #tpu.memory_space<smem>>
    %c0_i32 = arith.constant 0 : i32
    %c0_i32_0 = arith.constant 0 : i32
    %c0_i32_1 = arith.constant 0 : i32
    return %1, %c0_i32, %c0_i32_0 : i32, i32, i32
  }
  func.func @transform_3(%arg0: i32, %arg1: memref<4xi32, #tpu.memory_space<smem>>, %arg2: memref<4xi32, #tpu.memory_space<smem>>, %arg3: memref<4xi32, #tpu.memory_space<smem>>) -> (i32, i32, i32) {
    %0 = arith.index_cast %arg0 : i32 to index
    %1 = memref.load %arg1[%0] : memref<4xi32, #tpu.memory_space<smem>>
    %c0_i32 = arith.constant 0 : i32
    %c0_i32_0 = arith.constant 0 : i32
    %c0_i32_1 = arith.constant 0 : i32
    return %1, %c0_i32, %c0_i32_0 : i32, i32, i32
  }
  func.func @transform_4(%arg0: i32, %arg1: memref<4xi32, #tpu.memory_space<smem>>, %arg2: memref<4xi32, #tpu.memory_space<smem>>, %arg3: memref<4xi32, #tpu.memory_space<smem>>) -> (i32, i32, i32) {
    %0 = arith.index_cast %arg0 : i32 to index
    %1 = memref.load %arg1[%0] : memref<4xi32, #tpu.memory_space<smem>>
    %c0_i32 = arith.constant 0 : i32
    %c0_i32_0 = arith.constant 0 : i32
    %c0_i32_1 = arith.constant 0 : i32
    return %1, %c0_i32, %c0_i32_0 : i32, i32, i32
  }
  func.func @transform_5(%arg0: i32, %arg1: memref<4xi32, #tpu.memory_space<smem>>, %arg2: memref<4xi32, #tpu.memory_space<smem>>, %arg3: memref<4xi32, #tpu.memory_space<smem>>) -> (i32, i32, i32) {
    %0 = arith.index_cast %arg0 : i32 to index
    %1 = memref.load %arg1[%0] : memref<4xi32, #tpu.memory_space<smem>>
    %c0_i32 = arith.constant 0 : i32
    %c0_i32_0 = arith.constant 0 : i32
    %c0_i32_1 = arith.constant 0 : i32
    return %1, %c0_i32, %c0_i32_0 : i32, i32, i32
  }
  func.func @transform_6(%arg0: i32, %arg1: memref<4xi32, #tpu.memory_space<smem>>, %arg2: memref<4xi32, #tpu.memory_space<smem>>, %arg3: memref<4xi32, #tpu.memory_space<smem>>) -> (i32, i32, i32) {
    %0 = arith.index_cast %arg0 : i32 to index
    %1 = memref.load %arg1[%0] : memref<4xi32, #tpu.memory_space<smem>>
    %c0_i32 = arith.constant 0 : i32
    %c0_i32_0 = arith.constant 0 : i32
    %c0_i32_1 = arith.constant 0 : i32
    return %1, %c0_i32, %c0_i32_0 : i32, i32, i32
  }
  func.func @transform_7(%arg0: i32, %arg1: memref<4xi32, #tpu.memory_space<smem>>, %arg2: memref<4xi32, #tpu.memory_space<smem>>, %arg3: memref<4xi32, #tpu.memory_space<smem>>) -> (i32, i32, i32) {
    %0 = arith.index_cast %arg0 : i32 to index
    %1 = memref.load %arg1[%0] : memref<4xi32, #tpu.memory_space<smem>>
    %c0_i32 = arith.constant 0 : i32
    %c0_i32_0 = arith.constant 0 : i32
    %c0_i32_1 = arith.constant 0 : i32
    return %1, %c0_i32, %c0_i32_0 : i32, i32, i32
  }
}

</mosaic_0001>

<llo_original>
// kernel: tpu_custom_call.1
$region0: #{tpu_custom_call.1}
  #allocation0 [shape = 'u32[]', space=smem, size = 0x4, offset = 0x4, fixed_abs, tag = 'smem constant byte address 0x4 - core index']
  #allocation1 [shape = 'u32[144,128]{1,0:T(1,128)}', space=vmem, size = 0x12000, scoped, tag = 'internal scratch']
  #allocation2 [shape = 'f32[8,128]{1,0:T(8,128)}', space=vmem, size = 0x1000, scoped, tag = 'scratch operand']
  #allocation3 [shape = 's32[1]{0}', space=sflag, size = 0x4, scoped, tag = 'scoped memory for tpu_custom_call.1']
  #allocation4 [shape = 'u8[512]{0}', space=smem, size = 0x200, scoped, tag = 'prefetched SMEM operand 0']
  #allocation5 [shape = 'u8[512]{0}', space=smem, size = 0x200, scoped, tag = 'prefetched SMEM operand 1']
  #allocation6 [shape = 'u8[512]{0}', space=smem, size = 0x200, scoped, tag = 'prefetched SMEM operand 2']
  %s0 = inlined_call_operand.hbm [shape: s32[4], index: 0, kind: input, shape index: {}]
  %s1 = inlined_call_operand.vmem [shape: s32[4], index: 1, kind: input, shape index: {}]
  %s2 = inlined_call_operand.vmem [shape: s32[4], index: 2, kind: input, shape index: {}]
  %s3 = inlined_call_operand.hbm [shape: bf16[8,512], index: 3, kind: input, shape index: {}]
  %s4 = inlined_call_operand.hbm [shape: bf16[512,128], index: 4, kind: input, shape index: {}]
  %s5 = inlined_call_operand.vmem [shape: f32[4,1,128], index: 5, kind: input, shape index: {}]
  %s6 = inlined_call_operand.hbm [shape: f32[4,128,128], index: 6, kind: input, shape index: {}]
  %s7 = inlined_call_operand.vmem [shape: f32[4,1,128], index: 7, kind: input, shape index: {}]
  %s8 = inlined_call_operand.hbm [shape: f32[4,128,128], index: 8, kind: input, shape index: {}]
  %s9 = inlined_call_operand.vmem [shape: f32[4,1,128], index: 9, kind: input, shape index: {}]
  %s10 = inlined_call_operand.hbm [shape: f32[4,8,128], index: 10, kind: output, shape index: {}]
  %s11 = sld [smem:[#allocation0]]
  $region85: #{tpu_custom_call.1} parent=0
    _
  %s13 = ssub.s32 1, %s11
  %s14 = scalar_select 0, %s13, %s11
  %16 = dma.hbm_to_smem %s0, 16, [#allocation4], [#allocation3]
  %s17 = sshll.u32 %s1, 4
  %s18 = int_to_ptr.vmem [resolvable:$true] %s17
  %20 = dma.vmem_to_smem %s18, 16, [#allocation5], [#allocation3]
  %s21 = sshll.u32 %s2, 4
  %s22 = int_to_ptr.vmem [resolvable:$true] %s21
  %24 = dma.vmem_to_smem %s22, 16, [#allocation6], [#allocation3]
  %25 = dma.done [#allocation3], 48
  %26 = sfence
  $region1: #{tpu_custom_call.1} parent=0
    #allocation7 [shape = 'u8[4096]{0}', space=vmem, size = 0x1000, scoped, tag = 'input window, operand 3']
    #allocation8 [shape = 's32[2]{0}', space=sflag, size = 0x8, scoped, tag = 'scoped memory for tpu_custom_call.1']
    #allocation9 [shape = 's32[2]{0}', space=sflag, size = 0x8, scoped, tag = 'scoped memory for tpu_custom_call.1']
    #allocation10 [shape = 'u8[65536]{0}', space=vmem, size = 0x10000, scoped, tag = 'input window, operand 4']
    #allocation11 [shape = 's32[2]{0}', space=sflag, size = 0x8, scoped, tag = 'scoped memory for tpu_custom_call.1']
    #allocation12 [shape = 'u8[131072]{0}', space=vmem, size = 0x20000, scoped, tag = 'input window, operand 6']
    #allocation13 [shape = 'u8[131072]{0}', space=vmem, size = 0x20000, scoped, tag = 'input window, operand 8']
    #allocation14 [shape = 's32[2]{0}', space=sflag, size = 0x8, scoped, tag = 'scoped memory for tpu_custom_call.1']
    #allocation15 [shape = 'u8[8192]{0}', space=vmem, size = 0x2000, scoped, tag = 'output window, operand 0']
    %27 = vsyncpa [#allocation8], 0
    %s28 = scalar_lea.sflag [#allocation8], 1
    %29 = vsyncpa %s28, 0
    %30 = vsyncpa [#allocation11], 0
    %s31 = scalar_lea.sflag [#allocation11], 1
    %32 = vsyncpa %s31, 0
    %33 = vsyncpa [#allocation14], 0
    %s34 = scalar_lea.sflag [#allocation14], 1
    %35 = vsyncpa %s34, 0
    %36 = vsyncpa [#allocation9], 0
    %s37 = scalar_lea.sflag [#allocation9], 1
    %38 = vsyncpa %s37, 0
    loop: start=0, step=1, limit=6
    $region2: #{tpu_custom_call.1} parent=1 // loop_pre_header
      _
    $region3: #{tpu_custom_call.1} parent=1 // loop_header
      %s40 = sphi 0, %s44
      %p41 = scmp.ge.s32.totalorder %s40, 6
      %s50 = sphi 0, %s52
      %s53 = sphi 0, %s50
      %s54 = sphi 0, %s53
      %s70 = sphi 0, %s54
      %s76 = sphi 0, %s78
      %s79 = sphi 0, %s76
      %s80 = sphi 0, %s79
      %s96 = sphi 0, %s80
      %s104 = sphi 0, %s106
      %s107 = sphi 0, %s104
      %s108 = sphi 0, %s107
      %s124 = sphi 0, %s108
      %s132 = sphi 0, %s134
      %s135 = sphi 0, %s132
      %s136 = sphi 0, %s135
      %s152 = sphi 0, %s136
      %s160 = sphi 0, %s162
      %s163 = sphi 0, %s160
      %s164 = sphi 0, %s163
      %s180 = sphi 0, %s164
      %s188 = sphi 0, %s190
      %s191 = sphi 0, %s188
      %s192 = sphi 0, %s191
      %s208 = sphi 0, %s192
      %s216 = sphi 0, %s218
      %s219 = sphi 0, %s216
      %s220 = sphi 0, %s219
      %s236 = sphi 0, %s220
      %s244 = sphi 0, %s246
      %s247 = sphi 0, %s244
      %s248 = sphi 0, %s247
      %s264 = sphi 0, %s248
    $region4: #{tpu_custom_call.1} parent=1 // loop_header_branch
      %43 = sbr.rel (%p41) target = $region8
    $region5: #{tpu_custom_call.1} parent=1 // loop_body
      %s45 = ssub.s32 %s40, 1
      %s46 = ssub.s32 %s40, 2
      %s47 = sadd.s32 %s40, 1
      %s48 = ssub.s32 %s40, %s47
      %p49 = scmp.eq.s32.totalorder %s48, 0
      %s51 = sadd.s32 %s50, 1
      %s52 = scalar_select %p49, %s50, %s51
      %p55 = pneg %p49
      %p56 = scmp.eq.s32.totalorder %s40, 3
      %p57 = por %p55, %p56
      %p58 = scmp.ne.s32.totalorder %s50, %s53
      %p59 = scmp.eq.s32.totalorder %s40, 0
      %p60 = por %p58, %p59
      %p61 = scmp.ne.s32.totalorder %s50, %s53
      %p62 = scmp.eq.s32.totalorder %s45, 3
      %p63 = por %p61, %p62
      %p64 = scmp.ne.s32.totalorder %s53, %s54
      %p65 = scmp.eq.s32.totalorder %s45, 0
      %p66 = por %p64, %p65
      %p67 = scmp.ne.s32.totalorder %s53, %s54
      %p68 = scmp.eq.s32.totalorder %s46, 3
      %p69 = por %p67, %p68
      %p71 = scmp.ne.s32.totalorder %s54, %s70
      %p72 = scmp.eq.s32.totalorder %s46, 0
      %p73 = por %p71, %p72
      %s74 = ssub.s32 %s40, %s47
      %p75 = scmp.eq.s32.totalorder %s74, 0
      %s77 = sadd.s32 %s76, 1
      %s78 = scalar_select %p75, %s76, %s77
      %p81 = pneg %p75
      %p82 = scmp.eq.s32.totalorder %s40, 3
      %p83 = por %p81, %p82
      %p84 = scmp.ne.s32.totalorder %s76, %s79
      %p85 = scmp.eq.s32.totalorder %s40, 0
      %p86 = por %p84, %p85
      %p87 = scmp.ne.s32.totalorder %s76, %s79
      %p88 = scmp.eq.s32.totalorder %s45, 3
      %p89 = por %p87, %p88
      %p90 = scmp.ne.s32.totalorder %s79, %s80
      %p91 = scmp.eq.s32.totalorder %s45, 0
      %p92 = por %p90, %p91
      %p93 = scmp.ne.s32.totalorder %s79, %s80
      %p94 = scmp.eq.s32.totalorder %s46, 3
      %p95 = por %p93, %p94
      %p97 = scmp.ne.s32.totalorder %s80, %s96
      %p98 = scmp.eq.s32.totalorder %s46, 0
      %p99 = por %p97, %p98
      %s100 = sld [smem:[#allocation4 + %s40]]
      %s101 = sld [smem:[#allocation4 + %s47]]
      %s102 = ssub.s32 %s100, %s101
      %p103 = scmp.eq.s32.totalorder %s102, 0
      %s105 = sadd.s32 %s104, 1
      %s106 = scalar_select %p103, %s104, %s105
      %p109 = pneg %p103
      %p110 = scmp.eq.s32.totalorder %s40, 3
      %p111 = por %p109, %p110
      %p112 = scmp.ne.s32.totalorder %s104, %s107
      %p113 = scmp.eq.s32.totalorder %s40, 0
      %p114 = por %p112, %p113
      %p115 = scmp.ne.s32.totalorder %s104, %s107
      %p116 = scmp.eq.s32.totalorder %s45, 3
      %p117 = por %p115, %p116
      %p118 = scmp.ne.s32.totalorder %s107, %s108
      %p119 = scmp.eq.s32.totalorder %s45, 0
      %p120 = por %p118, %p119
      %p121 = scmp.ne.s32.totalorder %s107, %s108
      %p122 = scmp.eq.s32.totalorder %s46, 3
      %p123 = por %p121, %p122
      %p125 = scmp.ne.s32.totalorder %s108, %s124
      %p126 = scmp.eq.s32.totalorder %s46, 0
      %p127 = por %p125, %p126
      %s128 = sld [smem:[#allocation4 + %s40]]
      %s129 = sld [smem:[#allocation4 + %s47]]
      %s130 = ssub.s32 %s128, %s129
      %p131 = scmp.eq.s32.totalorder %s130, 0
      %s133 = sadd.s32 %s132, 1
      %s134 = scalar_select %p131, %s132, %s133
      %p137 = pneg %p131
      %p138 = scmp.eq.s32.totalorder %s40, 3
      %p139 = por %p137, %p138
      %p140 = scmp.ne.s32.totalorder %s132, %s135
      %p141 = scmp.eq.s32.totalorder %s40, 0
      %p142 = por %p140, %p141
      %p143 = scmp.ne.s32.totalorder %s132, %s135
      %p144 = scmp.eq.s32.totalorder %s45, 3
      %p145 = por %p143, %p144
      %p146 = scmp.ne.s32.totalorder %s135, %s136
      %p147 = scmp.eq.s32.totalorder %s45, 0
      %p148 = por %p146, %p147
      %p149 = scmp.ne.s32.totalorder %s135, %s136
      %p150 = scmp.eq.s32.totalorder %s46, 3
      %p151 = por %p149, %p150
      %p153 = scmp.ne.s32.totalorder %s136, %s152
      %p154 = scmp.eq.s32.totalorder %s46, 0
      %p155 = por %p153, %p154
      %s156 = sld [smem:[#allocation4 + %s40]]
      %s157 = sld [smem:[#allocation4 + %s47]]
      %s158 = ssub.s32 %s156, %s157
      %p159 = scmp.eq.s32.totalorder %s158, 0
      %s161 = sadd.s32 %s160, 1
      %s162 = scalar_select %p159, %s160, %s161
      %p165 = pneg %p159
      %p166 = scmp.eq.s32.totalorder %s40, 3
      %p167 = por %p165, %p166
      %p168 = scmp.ne.s32.totalorder %s160, %s163
      %p169 = scmp.eq.s32.totalorder %s40, 0
      %p170 = por %p168, %p169
      %p171 = scmp.ne.s32.totalorder %s160, %s163
      %p172 = scmp.eq.s32.totalorder %s45, 3
      %p173 = por %p171, %p172
      %p174 = scmp.ne.s32.totalorder %s163, %s164
      %p175 = scmp.eq.s32.totalorder %s45, 0
      %p176 = por %p174, %p175
      %p177 = scmp.ne.s32.totalorder %s163, %s164
      %p178 = scmp.eq.s32.totalorder %s46, 3
      %p179 = por %p177, %p178
      %p181 = scmp.ne.s32.totalorder %s164, %s180
      %p182 = scmp.eq.s32.totalorder %s46, 0
      %p183 = por %p181, %p182
      %s184 = sld [smem:[#allocation4 + %s40]]
      %s185 = sld [smem:[#allocation4 + %s47]]
      %s186 = ssub.s32 %s184, %s185
      %p187 = scmp.eq.s32.totalorder %s186, 0
      %s189 = sadd.s32 %s188, 1
      %s190 = scalar_select %p187, %s188, %s189
      %p193 = pneg %p187
      %p194 = scmp.eq.s32.totalorder %s40, 3
      %p195 = por %p193, %p194
      %p196 = scmp.ne.s32.totalorder %s188, %s191
      %p197 = scmp.eq.s32.totalorder %s40, 0
      %p198 = por %p196, %p197
      %p199 = scmp.ne.s32.totalorder %s188, %s191
      %p200 = scmp.eq.s32.totalorder %s45, 3
      %p201 = por %p199, %p200
      %p202 = scmp.ne.s32.totalorder %s191, %s192
      %p203 = scmp.eq.s32.totalorder %s45, 0
      %p204 = por %p202, %p203
      %p205 = scmp.ne.s32.totalorder %s191, %s192
      %p206 = scmp.eq.s32.totalorder %s46, 3
      %p207 = por %p205, %p206
      %p209 = scmp.ne.s32.totalorder %s192, %s208
      %p210 = scmp.eq.s32.totalorder %s46, 0
      %p211 = por %p209, %p210
      %s212 = sld [smem:[#allocation4 + %s40]]
      %s213 = sld [smem:[#allocation4 + %s47]]
      %s214 = ssub.s32 %s212, %s213
      %p215 = scmp.eq.s32.totalorder %s214, 0
      %s217 = sadd.s32 %s216, 1
      %s218 = scalar_select %p215, %s216, %s217
      %p221 = pneg %p215
      %p222 = scmp.eq.s32.totalorder %s40, 3
      %p223 = por %p221, %p222
      %p224 = scmp.ne.s32.totalorder %s216, %s219
      %p225 = scmp.eq.s32.totalorder %s40, 0
      %p226 = por %p224, %p225
      %p227 = scmp.ne.s32.totalorder %s216, %s219
      %p228 = scmp.eq.s32.totalorder %s45, 3
      %p229 = por %p227, %p228
      %p230 = scmp.ne.s32.totalorder %s219, %s220
      %p231 = scmp.eq.s32.totalorder %s45, 0
      %p232 = por %p230, %p231
      %p233 = scmp.ne.s32.totalorder %s219, %s220
      %p234 = scmp.eq.s32.totalorder %s46, 3
      %p235 = por %p233, %p234
      %p237 = scmp.ne.s32.totalorder %s220, %s236
      %p238 = scmp.eq.s32.totalorder %s46, 0
      %p239 = por %p237, %p238
      %s240 = sld [smem:[#allocation4 + %s40]]
      %s241 = sld [smem:[#allocation4 + %s47]]
      %s242 = ssub.s32 %s240, %s241
      %p243 = scmp.eq.s32.totalorder %s242, 0
      %s245 = sadd.s32 %s244, 1
      %s246 = scalar_select %p243, %s244, %s245
      %p249 = pneg %p243
      %p250 = scmp.eq.s32.totalorder %s40, 3
      %p251 = por %p249, %p250
      %p252 = scmp.ne.s32.totalorder %s244, %s247
      %p253 = scmp.eq.s32.totalorder %s40, 0
      %p254 = por %p252, %p253
      %p255 = scmp.ne.s32.totalorder %s244, %s247
      %p256 = scmp.eq.s32.totalorder %s45, 3
      %p257 = por %p255, %p256
      %p258 = scmp.ne.s32.totalorder %s247, %s248
      %p259 = scmp.eq.s32.totalorder %s45, 0
      %p260 = por %p258, %p259
      %p261 = scmp.ne.s32.totalorder %s247, %s248
      %p262 = scmp.eq.s32.totalorder %s46, 3
      %p263 = por %p261, %p262
      %p265 = scmp.ne.s32.totalorder %s248, %s264
      %p266 = scmp.eq.s32.totalorder %s46, 0
      %p267 = por %p265, %p266
      %p268 = scmp.le.s32.totalorder 1, %s40
      %p269 = scmp.lt.s32.totalorder %s40, 5
      %p270 = pnand %p268, %p269
      %p271 = pneg %p270
      // Predicated region
      $region9: #{tpu_custom_call.1} parent=5 // pred_check
        _
      $region10: #{tpu_custom_call.1} parent=5 // pred_check_branch
        %273 = sbr.rel (%p270) target = $region12
      $region11: #{tpu_custom_call.1} parent=5 // pred_region
        %s274 = ssub.s32 %s40, 1
      $region12: #{tpu_custom_call.1} parent=5 // pred_fallthru
        _
      %p275 = scmp.lt.s32.totalorder %s40, 4
      // Predicated region
      $region13: #{tpu_custom_call.1} parent=5 // pred_check
        %p276 = pneg %p275
      $region14: #{tpu_custom_call.1} parent=5 // pred_check_branch
        %278 = sbr.rel (%p276) target = $region16
      $region15: #{tpu_custom_call.1} parent=5 // pred_region
        // Predicated region
        $region17: #{tpu_custom_call.1} parent=15 // pred_check
          %p279 = pneg %p60
        $region18: #{tpu_custom_call.1} parent=15 // pred_check_branch
          %281 = sbr.rel (%p279) target = $region20
        $region19: #{tpu_custom_call.1} parent=15 // pred_region
          %s282 = sand.u32 %s50, 1
          %s283 = scalar_lea.sflag [#allocation8], %s282
          %s284 = sand.u32 %s50, 1
          %s285 = smul.addr %s284, 4
          %s286 = scalar_lea.vmem [#allocation7], %s285
          %s288 = ssub.s32 64, 64
          %289 = vsyncadd %s283, %s288
          %s290 = smul.addr %s40, 64
          %s291 = scalar_lea.hbm %s3, %s290
          %s293 = sshll.u32 %s286, 4
          %s294 = int_to_ptr.vmem [resolvable:$true] %s293
          %296 = dma.hbm_to_vmem [thread:$0]  %s291, 64, %s294, %s283
        $region20: #{tpu_custom_call.1} parent=15 // pred_fallthru
          _
        // Predicated region
        $region21: #{tpu_custom_call.1} parent=15 // pred_check
          %p297 = pneg %p86
        $region22: #{tpu_custom_call.1} parent=15 // pred_check_branch
          %299 = sbr.rel (%p297) target = $region24
        $region23: #{tpu_custom_call.1} parent=15 // pred_region
          %s300 = sand.u32 %s40, 1
          %s301 = scalar_lea.sflag [#allocation11], %s300
          %s302 = sand.u32 %s76, 1
          %s303 = smul.addr %s302, 64
          %s304 = scalar_lea.vmem [#allocation10], %s303
          %s305 = smul.u32 16, %s40
          %s307 = ssub.s32 1024, 1024
          %308 = vsyncadd %s301, %s307
          %s309 = smul.addr %s305, 64
          %s310 = scalar_lea.hbm %s4, %s309
          %s311 = sshll.u32 %s304, 4
          %s312 = int_to_ptr.vmem [resolvable:$true] %s311
          %317 = dma.hbm_to_vmem [thread:$0]  %s310, 1024, %s312, %s301, 64, 64, 4
        $region24: #{tpu_custom_call.1} parent=15 // pred_fallthru
          _
        // Predicated region
        $region25: #{tpu_custom_call.1} parent=15 // pred_check
          %p318 = pneg %p114
        $region26: #{tpu_custom_call.1} parent=15 // pred_check_branch
          %320 = sbr.rel (%p318) target = $region28
        $region27: #{tpu_custom_call.1} parent=15 // pred_region
          %s321 = sld [smem:[#allocation4 + %s40]]
          %p322 = scmp.lt.s32.totalorder %s321, 3
          %s323 = scalar_select %p322, %s321, 3
          %s324 = scalar_lea.vmem %s5, %s323
          %s325 = sld [smem:[#allocation4 + %s40]]
        $region28: #{tpu_custom_call.1} parent=15 // pred_fallthru
          _
        // Predicated region
        $region29: #{tpu_custom_call.1} parent=15 // pred_check
          %p326 = pneg %p142
        $region30: #{tpu_custom_call.1} parent=15 // pred_check_branch
          %328 = sbr.rel (%p326) target = $region32
        $region31: #{tpu_custom_call.1} parent=15 // pred_region
          %s329 = sand.u32 %s40, 1
          %s330 = scalar_lea.sflag [#allocation11], %s329
          %s331 = sand.u32 %s132, 1
          %s332 = smul.addr %s331, 128
          %s333 = scalar_lea.vmem [#allocation12], %s332
          %s334 = sld [smem:[#allocation4 + %s40]]
          %s336 = ssub.s32 2048, 2048
          %337 = vsyncadd %s330, %s336
          %s338 = smul.addr %s334, 16
          %s339 = smul.addr %s338, 128
          %s340 = scalar_lea.hbm %s6, %s339
          %s341 = sshll.u32 %s333, 4
          %s342 = int_to_ptr.vmem [resolvable:$true] %s341
          %347 = dma.hbm_to_vmem [thread:$0]  %s340, 2048, %s342, %s330, 128, 128, 8
        $region32: #{tpu_custom_call.1} parent=15 // pred_fallthru
          _
        // Predicated region
        $region33: #{tpu_custom_call.1} parent=15 // pred_check
          %p348 = pneg %p170
        $region34: #{tpu_custom_call.1} parent=15 // pred_check_branch
          %350 = sbr.rel (%p348) target = $region36
        $region35: #{tpu_custom_call.1} parent=15 // pred_region
          %s351 = sld [smem:[#allocation4 + %s40]]
          %p352 = scmp.lt.s32.totalorder %s351, 3
          %s353 = scalar_select %p352, %s351, 3
          %s354 = scalar_lea.vmem %s7, %s353
          %s355 = sld [smem:[#allocation4 + %s40]]
        $region36: #{tpu_custom_call.1} parent=15 // pred_fallthru
          _
        // Predicated region
        $region37: #{tpu_custom_call.1} parent=15 // pred_check
          %p356 = pneg %p198
        $region38: #{tpu_custom_call.1} parent=15 // pred_check_branch
          %358 = sbr.rel (%p356) target = $region40
        $region39: #{tpu_custom_call.1} parent=15 // pred_region
          %s359 = sand.u32 %s188, 1
          %s360 = scalar_lea.sflag [#allocation14], %s359
          %s361 = sand.u32 %s188, 1
          %s362 = smul.addr %s361, 128
          %s363 = scalar_lea.vmem [#allocation13], %s362
          %s364 = sld [smem:[#allocation4 + %s40]]
          %s366 = ssub.s32 2048, 2048
          %367 = vsyncadd %s360, %s366
          %s368 = smul.addr %s364, 16
          %s369 = smul.addr %s368, 128
          %s370 = scalar_lea.hbm %s8, %s369
          %s371 = sshll.u32 %s363, 4
          %s372 = int_to_ptr.vmem [resolvable:$true] %s371
          %377 = dma.hbm_to_vmem [thread:$0]  %s370, 2048, %s372, %s360, 128, 128, 8
        $region40: #{tpu_custom_call.1} parent=15 // pred_fallthru
          _
        // Predicated region
        $region41: #{tpu_custom_call.1} parent=15 // pred_check
          %p378 = pneg %p226
        $region42: #{tpu_custom_call.1} parent=15 // pred_check_branch
          %380 = sbr.rel (%p378) target = $region44
        $region43: #{tpu_custom_call.1} parent=15 // pred_region
          %s381 = sld [smem:[#allocation4 + %s40]]
          %p382 = scmp.lt.s32.totalorder %s381, 3
          %s383 = scalar_select %p382, %s381, 3
          %s384 = scalar_lea.vmem %s9, %s383
          %s385 = sld [smem:[#allocation4 + %s40]]
        $region44: #{tpu_custom_call.1} parent=15 // pred_fallthru
          _
      $region16: #{tpu_custom_call.1} parent=5 // pred_fallthru
        _
      %p386 = scmp.le.s32.totalorder 1, %s40
      %p387 = scmp.lt.s32.totalorder %s40, 5
      %p388 = pnand %p386, %p387
      %p389 = pneg %p388
      // Predicated region
      $region45: #{tpu_custom_call.1} parent=5 // pred_check
        _
      $region46: #{tpu_custom_call.1} parent=5 // pred_check_branch
        %391 = sbr.rel (%p388) target = $region48
      $region47: #{tpu_custom_call.1} parent=5 // pred_region
        %s392 = ssub.s32 %s40, 1
        %s393 = sand.u32 %s53, 1
        %s394 = scalar_lea.sflag [#allocation8], %s393
        %s395 = sand.u32 %s53, 1
        %s396 = smul.addr %s395, 4
        %s397 = scalar_lea.vmem [#allocation7], %s396
        // Predicated region
        $region49: #{tpu_custom_call.1} parent=47 // pred_check
          %p398 = pneg %p66
        $region50: #{tpu_custom_call.1} parent=47 // pred_check_branch
          %400 = sbr.rel (%p398) target = $region52
        $region51: #{tpu_custom_call.1} parent=47 // pred_region
          %401 = dma.done %s394, 64
        $region52: #{tpu_custom_call.1} parent=47 // pred_fallthru
          _
        %s402 = sand.u32 %s45, 1
        %s403 = scalar_lea.sflag [#allocation11], %s402
        %s404 = sand.u32 %s79, 1
        %s405 = smul.addr %s404, 64
        %s406 = scalar_lea.vmem [#allocation10], %s405
        // Predicated region
        $region53: #{tpu_custom_call.1} parent=47 // pred_check
          %p407 = pneg %p92
        $region54: #{tpu_custom_call.1} parent=47 // pred_check_branch
          %409 = sbr.rel (%p407) target = $region56
        $region55: #{tpu_custom_call.1} parent=47 // pred_region
          %410 = dma.done %s403, 1024
        $region56: #{tpu_custom_call.1} parent=47 // pred_fallthru
          _
        %s411 = sand.u32 %s45, 1
        %s412 = scalar_lea.sflag [#allocation11], %s411
        %s413 = sand.u32 %s135, 1
        %s414 = smul.addr %s413, 128
        %s415 = scalar_lea.vmem [#allocation12], %s414
        // Predicated region
        $region57: #{tpu_custom_call.1} parent=47 // pred_check
          %p416 = pneg %p148
        $region58: #{tpu_custom_call.1} parent=47 // pred_check_branch
          %418 = sbr.rel (%p416) target = $region60
        $region59: #{tpu_custom_call.1} parent=47 // pred_region
          %419 = dma.done %s412, 2048
        $region60: #{tpu_custom_call.1} parent=47 // pred_fallthru
          _
        %s420 = sand.u32 %s191, 1
        %s421 = scalar_lea.sflag [#allocation14], %s420
        %s422 = sand.u32 %s191, 1
        %s423 = smul.addr %s422, 128
        %s424 = scalar_lea.vmem [#allocation13], %s423
        // Predicated region
        $region61: #{tpu_custom_call.1} parent=47 // pred_check
          %p425 = pneg %p204
        $region62: #{tpu_custom_call.1} parent=47 // pred_check_branch
          %427 = sbr.rel (%p425) target = $region64
        $region63: #{tpu_custom_call.1} parent=47 // pred_region
          %428 = dma.done %s421, 2048
        $region64: #{tpu_custom_call.1} parent=47 // pred_fallthru
          _
        %s429 = sand.u32 %s53, 1
        %s430 = scalar_lea.sflag [#allocation8], %s429
        %s431 = sand.u32 %s53, 1
        %s432 = smul.addr %s431, 4
        %s433 = scalar_lea.vmem [#allocation7], %s432
        %p434 = pneg %p66
        %p435 = pneg %p63
        %s436 = sand.u32 %s45, 1
        %s437 = scalar_lea.sflag [#allocation11], %s436
        %s438 = sand.u32 %s79, 1
        %s439 = smul.addr %s438, 64
        %s440 = scalar_lea.vmem [#allocation10], %s439
        %p441 = pneg %p92
        %p442 = pneg %p89
        %s443 = sld [smem:[#allocation4 + %s45]]
        %p444 = scmp.lt.s32.totalorder %s443, 3
        %s445 = scalar_select %p444, %s443, 3
        %s446 = scalar_lea.vmem %s5, %s445
        %p447 = pneg %p120
        %p448 = pneg %p117
        %s449 = sand.u32 %s45, 1
        %s450 = scalar_lea.sflag [#allocation11], %s449
        %s451 = sand.u32 %s135, 1
        %s452 = smul.addr %s451, 128
        %s453 = scalar_lea.vmem [#allocation12], %s452
        %p454 = pneg %p148
        %p455 = pneg %p145
        %s456 = sld [smem:[#allocation4 + %s45]]
        %p457 = scmp.lt.s32.totalorder %s456, 3
        %s458 = scalar_select %p457, %s456, 3
        %s459 = scalar_lea.vmem %s7, %s458
        %p460 = pneg %p176
        %p461 = pneg %p173
        %s462 = sand.u32 %s191, 1
        %s463 = scalar_lea.sflag [#allocation14], %s462
        %s464 = sand.u32 %s191, 1
        %s465 = smul.addr %s464, 128
        %s466 = scalar_lea.vmem [#allocation13], %s465
        %p467 = pneg %p204
        %p468 = pneg %p201
        %s469 = sld [smem:[#allocation4 + %s45]]
        %p470 = scmp.lt.s32.totalorder %s469, 3
        %s471 = scalar_select %p470, %s469, 3
        %s472 = scalar_lea.vmem %s9, %s471
        %p473 = pneg %p232
        %p474 = pneg %p229
        %p475 = pneg %p260
        %p476 = pneg %p257
        %s477 = sand.u32 %s247, 1
        %s478 = scalar_lea.sflag [#allocation9], %s477
        %s479 = sand.u32 %s247, 1
        %s480 = smul.addr %s479, 8
        %s481 = scalar_lea.vmem [#allocation15], %s480
        %s482 = smul.u32 16, %s45
        %s483 = sld [smem:[#allocation4 + %s45]]
        %p484 = scmp.lt.s32.totalorder %s483, 3
        %s485 = scalar_select %p484, %s483, 3
        %s486 = scalar_lea.vmem %s5, %s485
        %s487 = sld [smem:[#allocation4 + %s45]]
        %s488 = sld [smem:[#allocation4 + %s45]]
        %s489 = sld [smem:[#allocation4 + %s45]]
        %p490 = scmp.lt.s32.totalorder %s489, 3
        %s491 = scalar_select %p490, %s489, 3
        %s492 = scalar_lea.vmem %s7, %s491
        %s493 = sld [smem:[#allocation4 + %s45]]
        %s494 = sld [smem:[#allocation4 + %s45]]
        %s495 = sld [smem:[#allocation4 + %s45]]
        %p496 = scmp.lt.s32.totalorder %s495, 3
        %s497 = scalar_select %p496, %s495, 3
        %s498 = scalar_lea.vmem %s9, %s497
        %s499 = sld [smem:[#allocation4 + %s45]]
        %s500 = sld [smem:[#allocation4 + %s45]]
        %s502 = sld [smem:[#allocation5 + %s45]]
        %p503 = scmp.eq.s32.totalorder %s502, 1
        // Predicated region
        $region65: #{tpu_custom_call.1} parent=47 // pred_check
          %p504 = pneg %p503
        $region66: #{tpu_custom_call.1} parent=47 // pred_check_branch
          %506 = sbr.rel (%p504) target = $region68
        $region67: #{tpu_custom_call.1} parent=47 // pred_region
          %507 = vst [vmem:[#allocation2] sm:$0xff] 0.0
        $region68: #{tpu_custom_call.1} parent=47 // pred_fallthru
          _
        %v508 = vld [vmem:[#allocation2] sm:$0xff]
        %v509 = vld [vmem:[%s397] sm:$0xf]
        %v510 = vld [vmem:[%s406] sm:$0xf]
        %v511 = vld [vmem:[%s406 + $0x4] sm:$0xf]
        %v512 = vld [vmem:[%s406 + $0x8] sm:$0xf]
        %v513 = vld [vmem:[%s406 + $0xc] sm:$0xf]
        %v514 = vld [vmem:[%s406 + $0x10] sm:$0xf]
        %v515 = vld [vmem:[%s406 + $0x14] sm:$0xf]
        %v516 = vld [vmem:[%s406 + $0x18] sm:$0xf]
        %v517 = vld [vmem:[%s406 + $0x1c] sm:$0xf]
        %v518 = vld [vmem:[%s406 + $0x20] sm:$0xf]
        %v519 = vld [vmem:[%s406 + $0x24] sm:$0xf]
        %v520 = vld [vmem:[%s406 + $0x28] sm:$0xf]
        %v521 = vld [vmem:[%s406 + $0x2c] sm:$0xf]
        %v522 = vld [vmem:[%s406 + $0x30] sm:$0xf]
        %v523 = vld [vmem:[%s406 + $0x34] sm:$0xf]
        %v524 = vld [vmem:[%s406 + $0x38] sm:$0xf]
        %v525 = vld [vmem:[%s406 + $0x3c] sm:$0xf]
        %v542 = vunpack.c.l.b16 %v510
        %v543 = vunpack.c.l.b16 %v511
        %v544 = vunpack.c.l.b16 %v512
        %v545 = vunpack.c.l.b16 %v513
        %v546 = vunpack.c.l.b16 %v514
        %v547 = vunpack.c.l.b16 %v515
        %v548 = vunpack.c.l.b16 %v516
        %v549 = vunpack.c.l.b16 %v517
        %v550 = vunpack.c.l.b16 %v518
        %v551 = vunpack.c.l.b16 %v519
        %v552 = vunpack.c.l.b16 %v520
        %v553 = vunpack.c.l.b16 %v521
        %v554 = vunpack.c.l.b16 %v522
        %v555 = vunpack.c.l.b16 %v523
        %v556 = vunpack.c.l.b16 %v524
        %v557 = vunpack.c.l.b16 %v525
        %v558 = vpack.c.b16 %v543, %v542
        %v559 = vpack.c.b16 %v545, %v544
        %v560 = vpack.c.b16 %v547, %v546
        %v561 = vpack.c.b16 %v549, %v548
        %v562 = vpack.c.b16 %v551, %v550
        %v563 = vpack.c.b16 %v553, %v552
        %v564 = vpack.c.b16 %v555, %v554
        %v565 = vpack.c.b16 %v557, %v556
        %574 = vmatprep.subr.bf16.mxu0 0
        %575 = vmatpush1.bf16.msra.mxu0 %v558
        %576 = vmatprep.subr.bf16.mxu0 0
        %577 = vmatpush1.bf16.msra.mxu0 %v559
        %578 = vmatprep.subr.bf16.mxu0 0
        %579 = vmatpush1.bf16.msra.mxu0 %v560
        %580 = vmatprep.subr.bf16.mxu0 0
        %581 = vmatpush1.bf16.msra.mxu0 %v561
        %582 = vmatprep.subr.bf16.mxu0 0
        %583 = vmatpush1.bf16.msra.mxu0 %v562
        %584 = vmatprep.subr.bf16.mxu0 0
        %585 = vmatpush1.bf16.msra.mxu0 %v563
        %586 = vmatprep.subr.bf16.mxu0 0
        %587 = vmatpush1.bf16.msra.mxu0 %v564
        %588 = vmatprep.subr.bf16.mxu0 0
        %589 = vmatpush1.bf16.msra.mxu0 %v565
        %590 = vmatprep.subr.bf16.mxu0 0
        %591 = vmatpush1.bf16.msra.mxu0 0
        %592 = vmatprep.subr.bf16.mxu0 0
        %593 = vmatpush1.bf16.msra.mxu0 0
        %594 = vmatprep.subr.bf16.mxu0 0
        %595 = vmatpush1.bf16.msra.mxu0 0
        %596 = vmatprep.subr.bf16.mxu0 0
        %597 = vmatpush1.bf16.msra.mxu0 0
        %598 = vmatprep.subr.bf16.mxu0 0
        %599 = vmatpush1.bf16.msra.mxu0 0
        %600 = vmatprep.subr.bf16.mxu0 0
        %601 = vmatpush1.bf16.msra.mxu0 0
        %602 = vmatprep.subr.bf16.mxu0 0
        %603 = vmatpush1.bf16.msra.mxu0 0
        %604 = vmatprep.subr.bf16.mxu0 0
        %605 = vmatpush1.bf16.msra.mxu0 0
        %606 = vmatprep.mubr.bf16.mxu0 0
        %607 = vmatmul.mubr.bf16.gmra.mrb[0].mxu0 %v509
        %v608 = vpop.f32.mrb[0].mxu0
        %v609 = vadd.f32 0.0, %v608
        %v610 = vpop.f32.mrb[0].mxu0
        %v611 = vpop.f32.mrb[0].mxu0
        %v612 = vpop.f32.mrb[0].mxu0
        %613 = vdwg.mxu0
        %v614 = vadd.f32 %v508, %v609
        %615 = vst [vmem:[#allocation2] sm:$0xff] %v614
        %s616 = sld [smem:[#allocation6 + %s45]]
        %p617 = scmp.eq.s32.totalorder %s616, 1
        // Predicated region
        $region69: #{tpu_custom_call.1} parent=47 // pred_check
          %p618 = pneg %p617
        $region70: #{tpu_custom_call.1} parent=47 // pred_check_branch
          %620 = sbr.rel (%p618) target = $region72
        $region71: #{tpu_custom_call.1} parent=47 // pred_region
          %v621 = vld [vmem:[#allocation2] sm:$0xff]
          %v622 = vld [vmem:[%s486] sm:$0x1]
          %v624 = vlaneseq
          %v625 = vshrl.u32 %v624, 7
          %v626 = vsub.s32 0, %v625
          %v627 = vrot.slane %v622, %v626
          %v629 = vadd.f32 %v621, %v627
          %v630 = vmax.f32 %v629, 0.0
          %v631 = vld [vmem:[%s415] sm:$0xff]
          %v632 = vld [vmem:[%s415 + $0x8] sm:$0xff]
          %v633 = vld [vmem:[%s415 + $0x10] sm:$0xff]
          %v634 = vld [vmem:[%s415 + $0x18] sm:$0xff]
          %v635 = vld [vmem:[%s415 + $0x20] sm:$0xff]
          %v636 = vld [vmem:[%s415 + $0x28] sm:$0xff]
          %v637 = vld [vmem:[%s415 + $0x30] sm:$0xff]
          %v638 = vld [vmem:[%s415 + $0x38] sm:$0xff]
          %v639 = vld [vmem:[%s415 + $0x40] sm:$0xff]
          %v640 = vld [vmem:[%s415 + $0x48] sm:$0xff]
          %v641 = vld [vmem:[%s415 + $0x50] sm:$0xff]
          %v642 = vld [vmem:[%s415 + $0x58] sm:$0xff]
          %v643 = vld [vmem:[%s415 + $0x60] sm:$0xff]
          %v644 = vld [vmem:[%s415 + $0x68] sm:$0xff]
          %v645 = vld [vmem:[%s415 + $0x70] sm:$0xff]
          %v646 = vld [vmem:[%s415 + $0x78] sm:$0xff]
          %v647 = vld [vmem:[%s492] sm:$0x1]
          %v649 = vlaneseq
          %v650 = vshrl.u32 %v649, 7
          %v651 = vsub.s32 0, %v650
          %v652 = vrot.slane %v647, %v651
          %654 = vmatprep.subr.mxu0 0.0
          %655 = vmatpush1.msra.mxu0 %v631
          %656 = vmatprep.subr.mxu0 0.0
          %657 = vmatpush1.msra.mxu0 %v632
          %658 = vmatprep.subr.mxu0 0.0
          %659 = vmatpush1.msra.mxu0 %v633
          %660 = vmatprep.subr.mxu0 0.0
          %661 = vmatpush1.msra.mxu0 %v634
          %662 = vmatprep.subr.mxu0 0.0
          %663 = vmatpush1.msra.mxu0 %v635
          %664 = vmatprep.subr.mxu0 0.0
          %665 = vmatpush1.msra.mxu0 %v636
          %666 = vmatprep.subr.mxu0 0.0
          %667 = vmatpush1.msra.mxu0 %v637
          %668 = vmatprep.subr.mxu0 0.0
          %669 = vmatpush1.msra.mxu0 %v638
          %670 = vmatprep.subr.mxu0 0.0
          %671 = vmatpush1.msra.mxu0 %v639
          %672 = vmatprep.subr.mxu0 0.0
          %673 = vmatpush1.msra.mxu0 %v640
          %674 = vmatprep.subr.mxu0 0.0
          %675 = vmatpush1.msra.mxu0 %v641
          %676 = vmatprep.subr.mxu0 0.0
          %677 = vmatpush1.msra.mxu0 %v642
          %678 = vmatprep.subr.mxu0 0.0
          %679 = vmatpush1.msra.mxu0 %v643
          %680 = vmatprep.subr.mxu0 0.0
          %681 = vmatpush1.msra.mxu0 %v644
          %682 = vmatprep.subr.mxu0 0.0
          %683 = vmatpush1.msra.mxu0 %v645
          %684 = vmatprep.subr.mxu0 0.0
          %685 = vmatpush1.msra.mxu0 %v646
          %686 = vmatprep.subr.mxu0 0.0
          %687 = vmatpush1.msra.mxu0 0.0
          %688 = vmatprep.subr.mxu0 0.0
          %689 = vmatpush1.msra.mxu0 0.0
          %690 = vmatprep.subr.mxu0 0.0
          %691 = vmatpush1.msra.mxu0 0.0
          %692 = vmatprep.subr.mxu0 0.0
          %693 = vmatpush1.msra.mxu0 0.0
          %694 = vmatprep.subr.mxu0 0.0
          %695 = vmatpush1.msra.mxu0 0.0
          %696 = vmatprep.subr.mxu0 0.0
          %697 = vmatpush1.msra.mxu0 0.0
          %698 = vmatprep.subr.mxu0 0.0
          %699 = vmatpush1.msra.mxu0 0.0
          %700 = vmatprep.subr.mxu0 0.0
          %701 = vmatpush1.msra.mxu0 0.0
          %702 = vmatprep.subr.mxu0 0.0
          %703 = vmatpush1.msra.mxu0 0.0
          %704 = vmatprep.subr.mxu0 0.0
          %705 = vmatpush1.msra.mxu0 0.0
          %706 = vmatprep.subr.mxu0 0.0
          %707 = vmatpush1.msra.mxu0 0.0
          %708 = vmatprep.subr.mxu0 0.0
          %709 = vmatpush1.msra.mxu0 0.0
          %710 = vmatprep.subr.mxu0 0.0
          %711 = vmatpush1.msra.mxu0 0.0
          %712 = vmatprep.subr.mxu0 0.0
          %713 = vmatpush1.msra.mxu0 0.0
          %714 = vmatprep.subr.mxu0 0.0
          %715 = vmatpush1.msra.mxu0 0.0
          %716 = vmatprep.subr.mxu0 0.0
          %717 = vmatpush1.msra.mxu0 0.0
          %718 = vmatprep.mubr.f32.mxu0 0.0
          %719 = vmatmul.mubr.f32.gmra.mrb[0].mxu0 %v630
          %v720 = vpop.f32.mrb[0].mxu0
          %v721 = vadd.f32 %v652, %v720
          %v722 = vpop.f32.mrb[0].mxu0
          %723 = vdwg.mxu0
          %v724 = vmax.f32 %v721, 0.0
          %v725 = vld [vmem:[%s424] sm:$0xff]
          %v726 = vld [vmem:[%s424 + $0x8] sm:$0xff]
          %v727 = vld [vmem:[%s424 + $0x10] sm:$0xff]
          %v728 = vld [vmem:[%s424 + $0x18] sm:$0xff]
          %v729 = vld [vmem:[%s424 + $0x20] sm:$0xff]
          %v730 = vld [vmem:[%s424 + $0x28] sm:$0xff]
          %v731 = vld [vmem:[%s424 + $0x30] sm:$0xff]
          %v732 = vld [vmem:[%s424 + $0x38] sm:$0xff]
          %v733 = vld [vmem:[%s424 + $0x40] sm:$0xff]
          %v734 = vld [vmem:[%s424 + $0x48] sm:$0xff]
          %v735 = vld [vmem:[%s424 + $0x50] sm:$0xff]
          %v736 = vld [vmem:[%s424 + $0x58] sm:$0xff]
          %v737 = vld [vmem:[%s424 + $0x60] sm:$0xff]
          %v738 = vld [vmem:[%s424 + $0x68] sm:$0xff]
          %v739 = vld [vmem:[%s424 + $0x70] sm:$0xff]
          %v740 = vld [vmem:[%s424 + $0x78] sm:$0xff]
          %v741 = vld [vmem:[%s498] sm:$0x1]
          %v743 = vlaneseq
          %v744 = vshrl.u32 %v743, 7
          %v745 = vsub.s32 0, %v744
          %v746 = vrot.slane %v741, %v745
          %748 = vmatprep.subr.mxu0 0.0
          %749 = vmatpush1.msra.mxu0 %v725
          %750 = vmatprep.subr.mxu0 0.0
          %751 = vmatpush1.msra.mxu0 %v726
          %752 = vmatprep.subr.mxu0 0.0
          %753 = vmatpush1.msra.mxu0 %v727
          %754 = vmatprep.subr.mxu0 0.0
          %755 = vmatpush1.msra.mxu0 %v728
          %756 = vmatprep.subr.mxu0 0.0
          %757 = vmatpush1.msra.mxu0 %v729
          %758 = vmatprep.subr.mxu0 0.0
          %759 = vmatpush1.msra.mxu0 %v730
          %760 = vmatprep.subr.mxu0 0.0
          %761 = vmatpush1.msra.mxu0 %v731
          %762 = vmatprep.subr.mxu0 0.0
          %763 = vmatpush1.msra.mxu0 %v732
          %764 = vmatprep.subr.mxu0 0.0
          %765 = vmatpush1.msra.mxu0 %v733
          %766 = vmatprep.subr.mxu0 0.0
          %767 = vmatpush1.msra.mxu0 %v734
          %768 = vmatprep.subr.mxu0 0.0
          %769 = vmatpush1.msra.mxu0 %v735
          %770 = vmatprep.subr.mxu0 0.0
          %771 = vmatpush1.msra.mxu0 %v736
          %772 = vmatprep.subr.mxu0 0.0
          %773 = vmatpush1.msra.mxu0 %v737
          %774 = vmatprep.subr.mxu0 0.0
          %775 = vmatpush1.msra.mxu0 %v738
          %776 = vmatprep.subr.mxu0 0.0
          %777 = vmatpush1.msra.mxu0 %v739
          %778 = vmatprep.subr.mxu0 0.0
          %779 = vmatpush1.msra.mxu0 %v740
          %780 = vmatprep.subr.mxu0 0.0
          %781 = vmatpush1.msra.mxu0 0.0
          %782 = vmatprep.subr.mxu0 0.0
          %783 = vmatpush1.msra.mxu0 0.0
          %784 = vmatprep.subr.mxu0 0.0
          %785 = vmatpush1.msra.mxu0 0.0
          %786 = vmatprep.subr.mxu0 0.0
          %787 = vmatpush1.msra.mxu0 0.0
          %788 = vmatprep.subr.mxu0 0.0
          %789 = vmatpush1.msra.mxu0 0.0
          %790 = vmatprep.subr.mxu0 0.0
          %791 = vmatpush1.msra.mxu0 0.0
          %792 = vmatprep.subr.mxu0 0.0
          %793 = vmatpush1.msra.mxu0 0.0
          %794 = vmatprep.subr.mxu0 0.0
          %795 = vmatpush1.msra.mxu0 0.0
          %796 = vmatprep.subr.mxu0 0.0
          %797 = vmatpush1.msra.mxu0 0.0
          %798 = vmatprep.subr.mxu0 0.0
          %799 = vmatpush1.msra.mxu0 0.0
          %800 = vmatprep.subr.mxu0 0.0
          %801 = vmatpush1.msra.mxu0 0.0
          %802 = vmatprep.subr.mxu0 0.0
          %803 = vmatpush1.msra.mxu0 0.0
          %804 = vmatprep.subr.mxu0 0.0
          %805 = vmatpush1.msra.mxu0 0.0
          %806 = vmatprep.subr.mxu0 0.0
          %807 = vmatpush1.msra.mxu0 0.0
          %808 = vmatprep.subr.mxu0 0.0
          %809 = vmatpush1.msra.mxu0 0.0
          %810 = vmatprep.subr.mxu0 0.0
          %811 = vmatpush1.msra.mxu0 0.0
          %812 = vmatprep.mubr.f32.mxu0 0.0
          %813 = vmatmul.mubr.f32.gmra.mrb[0].mxu0 %v724
          %v814 = vpop.f32.mrb[0].mxu0
          %v815 = vadd.f32 %v746, %v814
          %v816 = vpop.f32.mrb[0].mxu0
          %817 = vdwg.mxu0
          %818 = vst [vmem:[%s481] sm:$0xff] %v815
        $region72: #{tpu_custom_call.1} parent=47 // pred_fallthru
          _
        %s819 = sand.u32 %s247, 1
        %s820 = scalar_lea.sflag [#allocation9], %s819
        %s821 = sand.u32 %s247, 1
        %s822 = smul.addr %s821, 8
        %s823 = scalar_lea.vmem [#allocation15], %s822
        // Predicated region
        $region73: #{tpu_custom_call.1} parent=47 // pred_check
          %p824 = pneg %p257
        $region74: #{tpu_custom_call.1} parent=47 // pred_check_branch
          %826 = sbr.rel (%p824) target = $region76
        $region75: #{tpu_custom_call.1} parent=47 // pred_region
          %s827 = sld [smem:[#allocation4 + %s45]]
          %s829 = ssub.s32 128, 128
          %830 = vsyncadd %s820, %s829
          %s831 = smul.addr %s827, 128
          %s832 = scalar_lea.hbm %s10, %s831
          %s834 = sshll.u32 %s823, 4
          %s835 = int_to_ptr.vmem [resolvable:$true] %s834
          %837 = dma.vmem_to_hbm [thread:$0]  %s835, 128, %s832, %s820
        $region76: #{tpu_custom_call.1} parent=47 // pred_fallthru
          _
      $region48: #{tpu_custom_call.1} parent=5 // pred_fallthru
        _
      %p838 = scmp.le.s32.totalorder 2, %s40
      // Predicated region
      $region77: #{tpu_custom_call.1} parent=5 // pred_check
        %p839 = pneg %p838
      $region78: #{tpu_custom_call.1} parent=5 // pred_check_branch
        %841 = sbr.rel (%p839) target = $region80
      $region79: #{tpu_custom_call.1} parent=5 // pred_region
        %s842 = ssub.s32 %s40, 2
        // Predicated region
        $region81: #{tpu_custom_call.1} parent=79 // pred_check
          %p843 = pneg %p263
        $region82: #{tpu_custom_call.1} parent=79 // pred_check_branch
          %845 = sbr.rel (%p843) target = $region84
        $region83: #{tpu_custom_call.1} parent=79 // pred_region
          %s846 = sand.u32 %s248, 1
          %s847 = scalar_lea.sflag [#allocation9], %s846
          %s848 = sand.u32 %s248, 1
          %s849 = smul.addr %s848, 8
          %s850 = scalar_lea.vmem [#allocation15], %s849
          %851 = dma.done %s847, 128
        $region84: #{tpu_custom_call.1} parent=79 // pred_fallthru
          _
      $region80: #{tpu_custom_call.1} parent=5 // pred_fallthru
        _
    $region6: #{tpu_custom_call.1} parent=1 // loop_footer
      %s44 = sadd.s32 1, %s40
    $region7: #{tpu_custom_call.1} parent=1 // loop_footer_branch
      %39 = sbr.rel target = $region3
    $region8: #{tpu_custom_call.1} parent=1 // loop_exit
      _
    %852 = vsyncpa [#allocation8], 1
    %s853 = scalar_lea.sflag [#allocation8], 1
    %854 = vsyncpa %s853, 1
    %855 = vsyncpa [#allocation11], 1
    %s856 = scalar_lea.sflag [#allocation11], 1
    %857 = vsyncpa %s856, 1
    %858 = vsyncpa [#allocation14], 1
    %s859 = scalar_lea.sflag [#allocation14], 1
    %860 = vsyncpa %s859, 1
    %861 = vsyncpa [#allocation9], 1
    %s862 = scalar_lea.sflag [#allocation9], 1
    %863 = vsyncpa %s862, 1

</llo_original>
